<compile_context>
chip_gen: v7x
topology: tpu7x:2x2x1
jax: 0.10.0
libtpu: 0.0.40
codegen_flags: <defaults>
</compile_context>

<pallas_src>
import math
import jax
import jax.numpy as jnp
from jax.experimental import pallas as pl
from jax.experimental.pallas import tpu as pltpu

EMBED_DIM = 18            # fixed by the module (self.embed_dim = 18)
NUM_HEADS = 1             # module default
HEAD_DIM = EMBED_DIM // NUM_HEADS
SCALE = 1.0 / math.sqrt(HEAD_DIM)


def attention_mlp_forward(x, fused_params):
    """x: (B, S, E) float32. Returns (B, S*E) float32 (== attn_output.reshape(B, -1))."""
    B, S, E = x.shape
    assert E == EMBED_DIM

    w_qkv, b_qkv, wo, bo = fused_params            # (E,3E), (1,3E), (E,E), (1,E)
    x_flat = x.reshape(B * S, E)                   # free leading-dim collapse in XLA

    def kernel(x_ref, wqkv_ref, bqkv_ref, wo_ref, bo_ref, o_ref):
        xf = x_ref[...]                                                    # (B*S, E)

        # Fused QKV projection: one MXU pass with a 3E-wide output.
        qkv = jnp.dot(xf, wqkv_ref[...],
                      preferred_element_type=jnp.float32) + bqkv_ref[...]  # (B*S, 3E)

        # SCALE is already folded into Wq / bq.
        q = qkv[:, :E].reshape(B, S, E)
        k = qkv[:, E:2 * E].reshape(B, S, E)
        v = qkv[:, 2 * E:].reshape(B, S, E)

        # Scaled dot-product attention (single head), batched over B.
        # Contract on the last axes directly -> no materialized k.T.
        s = jnp.einsum('bqd,bkd->bqk', q, k,
                       preferred_element_type=jnp.float32)                 # (B, S, S)
        m = jnp.max(s, axis=-1, keepdims=True)
        p = jnp.exp(s - m)
        p = p / jnp.sum(p, axis=-1, keepdims=True)
        ctx = jnp.einsum('bqk,bkd->bqd', p, v,
                         preferred_element_type=jnp.float32)               # (B, S, E)

        # Output projection on the flattened slab (full-sublane MXU pass).
        out = jnp.dot(ctx.reshape(B * S, E), wo_ref[...],
                      preferred_element_type=jnp.float32) + bo_ref[...]    # (B*S, E)
        o_ref[...] = out.astype(o_ref.dtype)

    vmem = pl.BlockSpec(memory_space=pltpu.MemorySpace.VMEM)
    out2d = pl.pallas_call(
        kernel,
        out_shape=jax.ShapeDtypeStruct((B * S, E), jnp.float32),
        in_specs=[vmem, vmem, vmem, vmem, vmem],
        out_specs=vmem,
    )(x_flat, w_qkv, b_qkv, wo, bo)

    # Row order of out2d is (b, s) -> this reshape is exactly attn_output.reshape(B, -1).
    return out2d.reshape(B, S * E)


def init_params(key):
    """Deterministic synthetic parameters matching nn.MultiheadAttention(18, 1).

    Each projection is stored transposed as (E, E) so the math is a right-multiply
    (q = x @ Wq + bq); biases stored as (1, E).
    """
    E = EMBED_DIM
    ks = jax.random.split(key, 8)
    scale = 1.0 / math.sqrt(E)
    wq = jax.random.uniform(ks[0], (E, E), jnp.float32, -scale, scale)
    wk = jax.random.uniform(ks[1], (E, E), jnp.float32, -scale, scale)
    wv = jax.random.uniform(ks[2], (E, E), jnp.float32, -scale, scale)
    bq = jax.random.uniform(ks[3], (1, E), jnp.float32, -scale, scale)
    bk = jax.random.uniform(ks[4], (1, E), jnp.float32, -scale, scale)
    bv = jax.random.uniform(ks[5], (1, E), jnp.float32, -scale, scale)
    wo = jax.random.uniform(ks[6], (E, E), jnp.float32, -scale, scale)
    bo = jax.random.uniform(ks[7], (1, E), jnp.float32, -scale, scale)
    return (wq, wk, wv, bq, bk, bv, wo, bo)


def fuse_params(params):
    """One-time parameter prep: fuse QKV and fold the softmax scale into Wq/bq."""
    wq, wk, wv, bq, bk, bv, wo, bo = params
    w_qkv = jnp.concatenate([wq * SCALE, wk, wv], axis=1)   # (E, 3E)
    b_qkv = jnp.concatenate([bq * SCALE, bk, bv], axis=1)   # (1, 3E)
    return (w_qkv, b_qkv, wo, bo)


def reference_forward(x, params):
    """Pure-JAX reference of the PyTorch forward (uses the unfused params)."""
    wq, wk, wv, bq, bk, bv, wo, bo = params
    q = (x @ wq + bq) * SCALE
    k = x @ wk + bk
    v = x @ wv + bv
    s = jnp.einsum('bqd,bkd->bqk', q, k)
    p = jax.nn.softmax(s, axis=-1)
    ctx = jnp.einsum('bqk,bkd->bqd', p, v)
    out = ctx @ wo + bo
    return out.reshape(x.shape[0], -1)


if __name__ == "__main__":
    key = jax.random.PRNGKey(0)
    k_x, k_p = jax.random.split(key)

    B, S, E = 2, 8, EMBED_DIM          # input is (batch, seq, embed_dim=18)
    x = jax.random.normal(k_x, (B, S, E), dtype=jnp.float32)
    params = init_params(k_p)
    fused = fuse_params(params)

    y = attention_mlp_forward(x, fused)
    y = jax.block_until_ready(y)

    y_ref = reference_forward(x, params)
    assert y.shape == (B, S * E), y.shape
    assert jnp.allclose(y, y_ref, atol=1e-5, rtol=1e-5), "mismatch vs reference"

    print("KERNEL_OK")
</pallas_src>

<mosaic_0001>
module attributes {stable_mosaic.version = 11 : i64} {
  func.func @kernel(%arg0: memref<16x18xf32, #tpu.memory_space<vmem>>, %arg1: memref<18x54xf32, #tpu.memory_space<vmem>>, %arg2: memref<1x54xf32, #tpu.memory_space<vmem>>, %arg3: memref<18x18xf32, #tpu.memory_space<vmem>>, %arg4: memref<1x18xf32, #tpu.memory_space<vmem>>, %arg5: memref<16x18xf32, #tpu.memory_space<vmem>>) attributes {dimension_semantics = [], scalar_prefetch = 0 : i64, scratch_operands = 0 : i64, tpu.core_type = #tpu.core_type<tc>} {
    %c0 = arith.constant 0 : index
    %c0_0 = arith.constant 0 : index
    %0 = vector.load %arg0[%c0, %c0_0] : memref<16x18xf32, #tpu.memory_space<vmem>>, vector<16x18xf32>
    %c0_1 = arith.constant 0 : index
    %c0_2 = arith.constant 0 : index
    %1 = vector.load %arg1[%c0_1, %c0_2] : memref<18x54xf32, #tpu.memory_space<vmem>>, vector<18x54xf32>
    %cst = arith.constant dense<0.000000e+00> : vector<16x54xf32>
    %2 = tpu.matmul %0, %1, %cst {dimension_numbers = #tpu.dot_dimension_numbers<[1], [0], [0], [1], [0, 0, 1, 1], [], []>} : vector<16x18xf32>, vector<18x54xf32>, vector<16x54xf32> -> vector<16x54xf32>
    %c0_3 = arith.constant 0 : index
    %c0_4 = arith.constant 0 : index
    %3 = vector.load %arg2[%c0_3, %c0_4] : memref<1x54xf32, #tpu.memory_space<vmem>>, vector<1x54xf32>
    %4 = vector.broadcast %3 : vector<1x54xf32> to vector<16x54xf32>
    %5 = arith.addf %2, %4 : vector<16x54xf32>
    %6 = vector.extract_strided_slice %5 {offsets = [0, 0], sizes = [16, 18], strides = [1, 1]} : vector<16x54xf32> to vector<16x18xf32>
    %7 = vector.shape_cast %6 : vector<16x18xf32> to vector<2x8x18xf32>
    %8 = vector.extract_strided_slice %5 {offsets = [0, 18], sizes = [16, 18], strides = [1, 1]} : vector<16x54xf32> to vector<16x18xf32>
    %9 = vector.shape_cast %8 : vector<16x18xf32> to vector<2x8x18xf32>
    %10 = vector.extract_strided_slice %5 {offsets = [0, 36], sizes = [16, 18], strides = [1, 1]} : vector<16x54xf32> to vector<16x18xf32>
    %11 = vector.shape_cast %10 : vector<16x18xf32> to vector<2x8x18xf32>
    "tpu.trace_start"() <{level = 10 : i32, message = "bqd,bkd->bqk"}> : () -> ()
    %cst_5 = arith.constant dense<0.000000e+00> : vector<2x8x8xf32>
    %12 = tpu.matmul %7, %9, %cst_5 {dimension_numbers = #tpu.dot_dimension_numbers<[2], [2], [1], [1], [0, 0, 0, 1, 1, 1], [0], [0]>} : vector<2x8x18xf32>, vector<2x8x18xf32>, vector<2x8x8xf32> -> vector<2x8x8xf32>
    "tpu.trace_stop"() : () -> ()
    %cst_6 = arith.constant dense<0xFF800000> : vector<2x8xf32>
    %13 = vector.multi_reduction <maximumf>, %12, %cst_6 [2] : vector<2x8x8xf32> to vector<2x8xf32>
    %14 = vector.shape_cast %13 : vector<2x8xf32> to vector<2x8x1xf32>
    %15 = vector.broadcast %14 : vector<2x8x1xf32> to vector<2x8x8xf32>
    %16 = arith.subf %12, %15 : vector<2x8x8xf32>
    %17 = math.exp %16 : vector<2x8x8xf32>
    %cst_7 = arith.constant dense<0.000000e+00> : vector<2x8xf32>
    %18 = vector.multi_reduction <add>, %17, %cst_7 [2] : vector<2x8x8xf32> to vector<2x8xf32>
    %19 = vector.shape_cast %18 : vector<2x8xf32> to vector<2x8x1xf32>
    %20 = vector.broadcast %19 : vector<2x8x1xf32> to vector<2x8x8xf32>
    %21 = arith.divf %17, %20 : vector<2x8x8xf32>
    "tpu.trace_start"() <{level = 10 : i32, message = "bqk,bkd->bqd"}> : () -> ()
    %cst_8 = arith.constant dense<0.000000e+00> : vector<2x8x18xf32>
    %22 = tpu.matmul %21, %11, %cst_8 {dimension_numbers = #tpu.dot_dimension_numbers<[2], [1], [1], [2], [0, 0, 0, 1, 1, 2], [0], [0]>} : vector<2x8x8xf32>, vector<2x8x18xf32>, vector<2x8x18xf32> -> vector<2x8x18xf32>
    "tpu.trace_stop"() : () -> ()
    %23 = vector.shape_cast %22 : vector<2x8x18xf32> to vector<16x18xf32>
    %c0_9 = arith.constant 0 : index
    %c0_10 = arith.constant 0 : index
    %24 = vector.load %arg3[%c0_9, %c0_10] : memref<18x18xf32, #tpu.memory_space<vmem>>, vector<18x18xf32>
    %cst_11 = arith.constant dense<0.000000e+00> : vector<16x18xf32>
    %25 = tpu.matmul %23, %24, %cst_11 {dimension_numbers = #tpu.dot_dimension_numbers<[1], [0], [0], [1], [0, 0, 1, 1], [], []>} : vector<16x18xf32>, vector<18x18xf32>, vector<16x18xf32> -> vector<16x18xf32>
    %c0_12 = arith.constant 0 : index
    %c0_13 = arith.constant 0 : index
    %26 = vector.load %arg4[%c0_12, %c0_13] : memref<1x18xf32, #tpu.memory_space<vmem>>, vector<1x18xf32>
    %27 = vector.broadcast %26 : vector<1x18xf32> to vector<16x18xf32>
    %28 = arith.addf %25, %27 : vector<16x18xf32>
    %c0_14 = arith.constant 0 : index
    %c0_15 = arith.constant 0 : index
    %29 = vector.load %arg5[%c0_14, %c0_15] : memref<16x18xf32, #tpu.memory_space<vmem>>, vector<16x18xf32>
    tpu.vector_store %arg5[%c0_14, %c0_15], %28 {strides = array<i32>} : memref<16x18xf32, #tpu.memory_space<vmem>>, vector<16x18xf32>,
    return
  }
}

</mosaic_0001>

<llo_original>
// kernel: tpu_custom_call.1
$region0: #{tpu_custom_call.1}
  #allocation0 [shape = 'u32[]', space=smem, size = 0x4, offset = 0x4, fixed_abs, tag = 'smem constant byte address 0x4 - core index']
  #allocation1 [shape = 'u32[144,128]{1,0:T(1,128)}', space=vmem, size = 0x12000, scoped, tag = 'internal scratch']
  %s0 = inlined_call_operand.hbm [shape: f32[16,18], index: 0, kind: input, shape index: {}]
  %s1 = inlined_call_operand.hbm [shape: f32[18,54], index: 1, kind: input, shape index: {}]
  %s2 = inlined_call_operand.vmem [shape: f32[1,54], index: 2, kind: input, shape index: {}]
  %s3 = inlined_call_operand.hbm [shape: f32[18,18], index: 3, kind: input, shape index: {}]
  %s4 = inlined_call_operand.vmem [shape: f32[1,18], index: 4, kind: input, shape index: {}]
  %s5 = inlined_call_operand.hbm [shape: f32[16,18], index: 5, kind: output, shape index: {}]
  %s6 = sld [smem:[#allocation0]]
  $region42: #{tpu_custom_call.1} parent=0
    _
  %s8 = ssub.s32 1, %s6
  %s9 = scalar_select 0, %s8, %s6
  $region1: #{tpu_custom_call.1} parent=0
    #allocation2 [shape = 'u8[8192]{0}', space=vmem, size = 0x2000, scoped, tag = 'input window, operand 0, single buffered']
    #allocation3 [shape = 's32[1]{0}', space=sflag, size = 0x4, scoped, tag = 'scoped memory for tpu_custom_call.1']
    #allocation4 [shape = 's32[1]{0}', space=sflag, size = 0x4, scoped, tag = 'scoped memory for tpu_custom_call.1']
    #allocation5 [shape = 'u8[12288]{0}', space=vmem, size = 0x3000, scoped, tag = 'input window, operand 1, single buffered']
    #allocation6 [shape = 's32[1]{0}', space=sflag, size = 0x4, scoped, tag = 'scoped memory for tpu_custom_call.1']
    #allocation7 [shape = 'u8[12288]{0}', space=vmem, size = 0x3000, scoped, tag = 'input window, operand 3, single buffered']
    #allocation8 [shape = 'u8[8192]{0}', space=vmem, size = 0x2000, scoped, tag = 'output window, operand 0, single buffered']
    %10 = vsyncpa [#allocation3], 0
    %11 = vsyncpa [#allocation6], 0
    %12 = vsyncpa [#allocation4], 0
    // Predicated region
    $region2: #{tpu_custom_call.1} parent=1 // pred_check
      _
    $region3: #{tpu_custom_call.1} parent=1 // pred_check_branch
      %14 = sbr.rel (0) target = $region5
    $region4: #{tpu_custom_call.1} parent=1 // pred_region
      %s16 = ssub.s32 256, 256
      %17 = vsyncadd [#allocation3], %s16
      %s18 = sshll.u32 [#allocation2], 4
      %s19 = int_to_ptr.vmem [resolvable:$true] %s18
      %24 = dma.hbm_to_vmem [thread:$0]  %s0, 256, %s19, [#allocation3], 128, 128, 8
    $region5: #{tpu_custom_call.1} parent=1 // pred_fallthru
      _
    // Predicated region
    $region6: #{tpu_custom_call.1} parent=1 // pred_check
      _
    $region7: #{tpu_custom_call.1} parent=1 // pred_check_branch
      %26 = sbr.rel (0) target = $region9
    $region8: #{tpu_custom_call.1} parent=1 // pred_region
      %s28 = ssub.s32 384, 384
      %29 = vsyncadd [#allocation6], %s28
      %s30 = sshll.u32 [#allocation5], 4
      %s31 = int_to_ptr.vmem [resolvable:$true] %s30
      %36 = dma.hbm_to_vmem [thread:$0]  %s1, 384, %s31, [#allocation6], 128, 128, 8
    $region9: #{tpu_custom_call.1} parent=1 // pred_fallthru
      _
    // Predicated region
    $region10: #{tpu_custom_call.1} parent=1 // pred_check
      _
    $region11: #{tpu_custom_call.1} parent=1 // pred_check_branch
      %38 = sbr.rel (0) target = $region13
    $region12: #{tpu_custom_call.1} parent=1 // pred_region
      _
    $region13: #{tpu_custom_call.1} parent=1 // pred_fallthru
      _
    // Predicated region
    $region14: #{tpu_custom_call.1} parent=1 // pred_check
      _
    $region15: #{tpu_custom_call.1} parent=1 // pred_check_branch
      %40 = sbr.rel (0) target = $region17
    $region16: #{tpu_custom_call.1} parent=1 // pred_region
      %s42 = ssub.s32 384, 384
      %43 = vsyncadd [#allocation6], %s42
      %s44 = sshll.u32 [#allocation7], 4
      %s45 = int_to_ptr.vmem [resolvable:$true] %s44
      %50 = dma.hbm_to_vmem [thread:$0]  %s3, 384, %s45, [#allocation6], 128, 128, 8
    $region17: #{tpu_custom_call.1} parent=1 // pred_fallthru
      _
    // Predicated region
    $region18: #{tpu_custom_call.1} parent=1 // pred_check
      _
    $region19: #{tpu_custom_call.1} parent=1 // pred_check_branch
      %52 = sbr.rel (0) target = $region21
    $region20: #{tpu_custom_call.1} parent=1 // pred_region
      _
    $region21: #{tpu_custom_call.1} parent=1 // pred_fallthru
      _
    // Predicated region
    $region22: #{tpu_custom_call.1} parent=1 // pred_check
      _
    $region23: #{tpu_custom_call.1} parent=1 // pred_check_branch
      %54 = sbr.rel (0) target = $region25
    $region24: #{tpu_custom_call.1} parent=1 // pred_region
      %55 = dma.done [#allocation3], 256
    $region25: #{tpu_custom_call.1} parent=1 // pred_fallthru
      _
    // Predicated region
    $region26: #{tpu_custom_call.1} parent=1 // pred_check
      _
    $region27: #{tpu_custom_call.1} parent=1 // pred_check_branch
      %57 = sbr.rel (0) target = $region29
    $region28: #{tpu_custom_call.1} parent=1 // pred_region
      %58 = dma.done [#allocation6], 384
    $region29: #{tpu_custom_call.1} parent=1 // pred_fallthru
      _
    // Predicated region
    $region30: #{tpu_custom_call.1} parent=1 // pred_check
      _
    $region31: #{tpu_custom_call.1} parent=1 // pred_check_branch
      %60 = sbr.rel (0) target = $region33
    $region32: #{tpu_custom_call.1} parent=1 // pred_region
      %61 = dma.done [#allocation6], 384
    $region33: #{tpu_custom_call.1} parent=1 // pred_fallthru
      _
    %v62 = vld [vmem:[#allocation2] sm:$0xff]
    %v63 = vld [vmem:[#allocation2 + $0x8] sm:$0xff]
    %v64 = vld [vmem:[#allocation5] sm:$0xff]
    %v65 = vld [vmem:[#allocation5 + $0x8] sm:$0xff]
    %v66 = vld [vmem:[#allocation5 + $0x10] sm:$0x3]
    %v67 = vld [vmem:[%s2] sm:$0x1]
    %v69 = vlaneseq
    %v70 = vshrl.u32 %v69, 7
    %v71 = vsub.s32 0, %v70
    %v72 = vrot.slane %v67, %v71
    %vm74 = vcmask 146432
    %v76 = vsel %vm74, %v62, 0
    %v79 = vsel %vm74, %v63, 0
    %vm81 = vcmask 1041408
    %v83 = vsel %vm81, %v66, 0
    %85 = vmatprep.subr.mxu0 0.0
    %86 = vmatpush1.msra.mxu0 %v64
    %87 = vmatprep.subr.mxu0 0.0
    %88 = vmatpush1.msra.mxu0 %v65
    %89 = vmatprep.subr.mxu0 0.0
    %90 = vmatpush1.msra.mxu0 %v83
    %91 = vmatprep.subr.mxu0 0.0
    %92 = vmatpush1.msra.mxu0 0.0
    %93 = vmatprep.subr.mxu0 0.0
    %94 = vmatpush1.msra.mxu0 0.0
    %95 = vmatprep.subr.mxu0 0.0
    %96 = vmatpush1.msra.mxu0 0.0
    %97 = vmatprep.subr.mxu0 0.0
    %98 = vmatpush1.msra.mxu0 0.0
    %99 = vmatprep.subr.mxu0 0.0
    %100 = vmatpush1.msra.mxu0 0.0
    %101 = vmatprep.subr.mxu0 0.0
    %102 = vmatpush1.msra.mxu0 0.0
    %103 = vmatprep.subr.mxu0 0.0
    %104 = vmatpush1.msra.mxu0 0.0
    %105 = vmatprep.subr.mxu0 0.0
    %106 = vmatpush1.msra.mxu0 0.0
    %107 = vmatprep.subr.mxu0 0.0
    %108 = vmatpush1.msra.mxu0 0.0
    %109 = vmatprep.subr.mxu0 0.0
    %110 = vmatpush1.msra.mxu0 0.0
    %111 = vmatprep.subr.mxu0 0.0
    %112 = vmatpush1.msra.mxu0 0.0
    %113 = vmatprep.subr.mxu0 0.0
    %114 = vmatpush1.msra.mxu0 0.0
    %115 = vmatprep.subr.mxu0 0.0
    %116 = vmatpush1.msra.mxu0 0.0
    %117 = vmatprep.subr.mxu0 0.0
    %118 = vmatpush1.msra.mxu0 0.0
    %119 = vmatprep.subr.mxu0 0.0
    %120 = vmatpush1.msra.mxu0 0.0
    %121 = vmatprep.subr.mxu0 0.0
    %122 = vmatpush1.msra.mxu0 0.0
    %123 = vmatprep.subr.mxu0 0.0
    %124 = vmatpush1.msra.mxu0 0.0
    %125 = vmatprep.subr.mxu0 0.0
    %126 = vmatpush1.msra.mxu0 0.0
    %127 = vmatprep.subr.mxu0 0.0
    %128 = vmatpush1.msra.mxu0 0.0
    %129 = vmatprep.subr.mxu0 0.0
    %130 = vmatpush1.msra.mxu0 0.0
    %131 = vmatprep.subr.mxu0 0.0
    %132 = vmatpush1.msra.mxu0 0.0
    %133 = vmatprep.subr.mxu0 0.0
    %134 = vmatpush1.msra.mxu0 0.0
    %135 = vmatprep.subr.mxu0 0.0
    %136 = vmatpush1.msra.mxu0 0.0
    %137 = vmatprep.subr.mxu0 0.0
    %138 = vmatpush1.msra.mxu0 0.0
    %139 = vmatprep.subr.mxu0 0.0
    %140 = vmatpush1.msra.mxu0 0.0
    %141 = vmatprep.subr.mxu0 0.0
    %142 = vmatpush1.msra.mxu0 0.0
    %143 = vmatprep.subr.mxu0 0.0
    %144 = vmatpush1.msra.mxu0 0.0
    %145 = vmatprep.subr.mxu0 0.0
    %146 = vmatpush1.msra.mxu0 0.0
    %147 = vmatprep.subr.mxu0 0.0
    %148 = vmatpush1.msra.mxu0 0.0
    %149 = vmatprep.mubr.f32.mxu0 0.0
    %150 = vmatmul.mubr.f32.gmra.mrb[0].mxu0 %v76
    %v151 = vpop.f32.mrb[0].mxu0
    %v152 = vadd.f32 %v72, %v151
    %v153 = vpop.f32.mrb[0].mxu0
    %154 = vmatprep.mubr.f32.mxu0 0.0
    %155 = vmatmul.mubr.f32.gmra.mrb[0].mxu0 %v79
    %v156 = vpop.f32.mrb[0].mxu0
    %v157 = vadd.f32 %v72, %v156
    %v158 = vpop.f32.mrb[0].mxu0
    %159 = vdwg.mxu0
    %161 = vrot.lane.b32.xlu0 %v152, 110
    %v162 = vpop.permute.xlu0 %161
    %v163 = vsel %vm74, %v152, 0
    %v165 = vsel %vm74, %v162, 0
    %167 = vmatprep.subr.mxu0 0.0
    %168 = vmatpush1.xpose.msra.mxu0 %v165
    %169 = vmatprep.subr.mxu0 0.0
    %170 = vmatpush1.xpose.msra.mxu0 0.0
    %171 = vmatprep.subr.mxu0 0.0
    %172 = vmatpush1.xpose.msra.mxu0 0.0
    %173 = vmatprep.subr.mxu0 0.0
    %174 = vmatpush1.xpose.msra.mxu0 0.0
    %175 = vmatprep.subr.mxu0 0.0
    %176 = vmatpush1.xpose.msra.mxu0 0.0
    %177 = vmatprep.subr.mxu0 0.0
    %178 = vmatpush1.xpose.msra.mxu0 0.0
    %179 = vmatprep.subr.mxu0 0.0
    %180 = vmatpush1.xpose.msra.mxu0 0.0
    %181 = vmatprep.subr.mxu0 0.0
    %182 = vmatpush1.xpose.msra.mxu0 0.0
    %183 = vmatprep.subr.mxu0 0.0
    %184 = vmatpush1.xpose.msra.mxu0 0.0
    %185 = vmatprep.subr.mxu0 0.0
    %186 = vmatpush1.xpose.msra.mxu0 0.0
    %187 = vmatprep.subr.mxu0 0.0
    %188 = vmatpush1.xpose.msra.mxu0 0.0
    %189 = vmatprep.subr.mxu0 0.0
    %190 = vmatpush1.xpose.msra.mxu0 0.0
    %191 = vmatprep.subr.mxu0 0.0
    %192 = vmatpush1.xpose.msra.mxu0 0.0
    %193 = vmatprep.subr.mxu0 0.0
    %194 = vmatpush1.xpose.msra.mxu0 0.0
    %195 = vmatprep.subr.mxu0 0.0
    %196 = vmatpush1.xpose.msra.mxu0 0.0
    %197 = vmatprep.subr.mxu0 0.0
    %198 = vmatpush1.xpose.msra.mxu0 0.0
    %199 = vmatprep.subr.mxu0 0.0
    %200 = vmatpush1.xpose.msra.mxu0 0.0
    %201 = vmatprep.subr.mxu0 0.0
    %202 = vmatpush1.xpose.msra.mxu0 0.0
    %203 = vmatprep.subr.mxu0 0.0
    %204 = vmatpush1.xpose.msra.mxu0 0.0
    %205 = vmatprep.subr.mxu0 0.0
    %206 = vmatpush1.xpose.msra.mxu0 0.0
    %207 = vmatprep.subr.mxu0 0.0
    %208 = vmatpush1.xpose.msra.mxu0 0.0
    %209 = vmatprep.subr.mxu0 0.0
    %210 = vmatpush1.xpose.msra.mxu0 0.0
    %211 = vmatprep.subr.mxu0 0.0
    %212 = vmatpush1.xpose.msra.mxu0 0.0
    %213 = vmatprep.subr.mxu0 0.0
    %214 = vmatpush1.xpose.msra.mxu0 0.0
    %215 = vmatprep.subr.mxu0 0.0
    %216 = vmatpush1.xpose.msra.mxu0 0.0
    %217 = vmatprep.subr.mxu0 0.0
    %218 = vmatpush1.xpose.msra.mxu0 0.0
    %219 = vmatprep.subr.mxu0 0.0
    %220 = vmatpush1.xpose.msra.mxu0 0.0
    %221 = vmatprep.subr.mxu0 0.0
    %222 = vmatpush1.xpose.msra.mxu0 0.0
    %223 = vmatprep.subr.mxu0 0.0
    %224 = vmatpush1.xpose.msra.mxu0 0.0
    %225 = vmatprep.subr.mxu0 0.0
    %226 = vmatpush1.xpose.msra.mxu0 0.0
    %227 = vmatprep.subr.mxu0 0.0
    %228 = vmatpush1.xpose.msra.mxu0 0.0
    %229 = vmatprep.subr.mxu0 0.0
    %230 = vmatpush1.xpose.msra.mxu0 0.0
    %231 = vmatprep.mubr.f32.mxu0 0.0
    %232 = vmatmul.mubr.f32.gmra.mrb[0].mxu0 %v163
    %v233 = vpop.f32.mrb[0].mxu0
    %v234 = vadd.f32 0.0, %v233
    %v235 = vpop.f32.mrb[0].mxu0
    %236 = vdwg.mxu0
    %238 = vrot.lane.b32.xlu0 %v157, 110
    %v239 = vpop.permute.xlu0 %238
    %v240 = vsel %vm74, %v157, 0
    %v242 = vsel %vm74, %v239, 0
    %244 = vmatprep.subr.mxu0 0.0
    %245 = vmatpush1.xpose.msra.mxu0 %v242
    %246 = vmatprep.subr.mxu0 0.0
    %247 = vmatpush1.xpose.msra.mxu0 0.0
    %248 = vmatprep.subr.mxu0 0.0
    %249 = vmatpush1.xpose.msra.mxu0 0.0
    %250 = vmatprep.subr.mxu0 0.0
    %251 = vmatpush1.xpose.msra.mxu0 0.0
    %252 = vmatprep.subr.mxu0 0.0
    %253 = vmatpush1.xpose.msra.mxu0 0.0
    %254 = vmatprep.subr.mxu0 0.0
    %255 = vmatpush1.xpose.msra.mxu0 0.0
    %256 = vmatprep.subr.mxu0 0.0
    %257 = vmatpush1.xpose.msra.mxu0 0.0
    %258 = vmatprep.subr.mxu0 0.0
    %259 = vmatpush1.xpose.msra.mxu0 0.0
    %260 = vmatprep.subr.mxu0 0.0
    %261 = vmatpush1.xpose.msra.mxu0 0.0
    %262 = vmatprep.subr.mxu0 0.0
    %263 = vmatpush1.xpose.msra.mxu0 0.0
    %264 = vmatprep.subr.mxu0 0.0
    %265 = vmatpush1.xpose.msra.mxu0 0.0
    %266 = vmatprep.subr.mxu0 0.0
    %267 = vmatpush1.xpose.msra.mxu0 0.0
    %268 = vmatprep.subr.mxu0 0.0
    %269 = vmatpush1.xpose.msra.mxu0 0.0
    %270 = vmatprep.subr.mxu0 0.0
    %271 = vmatpush1.xpose.msra.mxu0 0.0
    %272 = vmatprep.subr.mxu0 0.0
    %273 = vmatpush1.xpose.msra.mxu0 0.0
    %274 = vmatprep.subr.mxu0 0.0
    %275 = vmatpush1.xpose.msra.mxu0 0.0
    %276 = vmatprep.subr.mxu0 0.0
    %277 = vmatpush1.xpose.msra.mxu0 0.0
    %278 = vmatprep.subr.mxu0 0.0
    %279 = vmatpush1.xpose.msra.mxu0 0.0
    %280 = vmatprep.subr.mxu0 0.0
    %281 = vmatpush1.xpose.msra.mxu0 0.0
    %282 = vmatprep.subr.mxu0 0.0
    %283 = vmatpush1.xpose.msra.mxu0 0.0
    %284 = vmatprep.subr.mxu0 0.0
    %285 = vmatpush1.xpose.msra.mxu0 0.0
    %286 = vmatprep.subr.mxu0 0.0
    %287 = vmatpush1.xpose.msra.mxu0 0.0
    %288 = vmatprep.subr.mxu0 0.0
    %289 = vmatpush1.xpose.msra.mxu0 0.0
    %290 = vmatprep.subr.mxu0 0.0
    %291 = vmatpush1.xpose.msra.mxu0 0.0
    %292 = vmatprep.subr.mxu0 0.0
    %293 = vmatpush1.xpose.msra.mxu0 0.0
    %294 = vmatprep.subr.mxu0 0.0
    %295 = vmatpush1.xpose.msra.mxu0 0.0
    %296 = vmatprep.subr.mxu0 0.0
    %297 = vmatpush1.xpose.msra.mxu0 0.0
    %298 = vmatprep.subr.mxu0 0.0
    %299 = vmatpush1.xpose.msra.mxu0 0.0
    %300 = vmatprep.subr.mxu0 0.0
    %301 = vmatpush1.xpose.msra.mxu0 0.0
    %302 = vmatprep.subr.mxu0 0.0
    %303 = vmatpush1.xpose.msra.mxu0 0.0
    %304 = vmatprep.subr.mxu0 0.0
    %305 = vmatpush1.xpose.msra.mxu0 0.0
    %306 = vmatprep.subr.mxu0 0.0
    %307 = vmatpush1.xpose.msra.mxu0 0.0
    %308 = vmatprep.mubr.f32.mxu0 0.0
    %309 = vmatmul.mubr.f32.gmra.mrb[0].mxu0 %v240
    %v310 = vpop.f32.mrb[0].mxu0
    %v311 = vadd.f32 0.0, %v310
    %v312 = vpop.f32.mrb[0].mxu0
    %313 = vdwg.mxu0
    %vm314 = vcmask 64512
    %v315 = vsel %vm314, %v234, -inf
    %316 = vmax.xlane.f32.xlu0 %v315
    %v317 = vpop.xlane.xlu0 %316
    %v318 = vsel %vm314, %v311, -inf
    %319 = vmax.xlane.f32.xlu0 %v318
    %v320 = vpop.xlane.xlu0 %319
    %v321 = vsub.f32 %v234, %v317
    %v322 = vsub.f32 %v311, %v320
    %v323 = vmul.f32 %v321, 1.442695
    %v324 = vpow.pop %v323
    %v325 = vmul.f32 %v322, 1.442695
    %v326 = vpow.pop %v325
    %v327 = vsel %vm314, %v324, 0.0
    %328 = vadd.xlane.f32.xlu0 %v327
    %v329 = vpop.xlane.xlu0 %328
    %v330 = vsel %vm314, %v326, 0.0
    %331 = vadd.xlane.f32.xlu0 %v330
    %v332 = vpop.xlane.xlu0 %331
    %v333 = vrcp.pop %v329
    %v334 = vmul.f32 %v324, %v333
    %v335 = vrcp.pop %v332
    %v336 = vmul.f32 %v326, %v335
    %337 = vrot.lane.b32.xlu0 %v152, 92
    %v338 = vpop.permute.xlu0 %337
    %v341 = vsel %vm314, %v334, 0
    %343 = vmatprep.subr.mxu0 0.0
    %344 = vmatpush1.msra.mxu0 %v338
    %345 = vmatprep.subr.mxu0 0.0
    %346 = vmatpush1.msra.mxu0 0.0
    %347 = vmatprep.subr.mxu0 0.0
    %348 = vmatpush1.msra.mxu0 0.0
    %349 = vmatprep.subr.mxu0 0.0
    %350 = vmatpush1.msra.mxu0 0.0
    %351 = vmatprep.subr.mxu0 0.0
    %352 = vmatpush1.msra.mxu0 0.0
    %353 = vmatprep.subr.mxu0 0.0
    %354 = vmatpush1.msra.mxu0 0.0
    %355 = vmatprep.subr.mxu0 0.0
    %356 = vmatpush1.msra.mxu0 0.0
    %357 = vmatprep.subr.mxu0 0.0
    %358 = vmatpush1.msra.mxu0 0.0
    %359 = vmatprep.subr.mxu0 0.0
    %360 = vmatpush1.msra.mxu0 0.0
    %361 = vmatprep.subr.mxu0 0.0
    %362 = vmatpush1.msra.mxu0 0.0
    %363 = vmatprep.subr.mxu0 0.0
    %364 = vmatpush1.msra.mxu0 0.0
    %365 = vmatprep.subr.mxu0 0.0
    %366 = vmatpush1.msra.mxu0 0.0
    %367 = vmatprep.subr.mxu0 0.0
    %368 = vmatpush1.msra.mxu0 0.0
    %369 = vmatprep.subr.mxu0 0.0
    %370 = vmatpush1.msra.mxu0 0.0
    %371 = vmatprep.subr.mxu0 0.0
    %372 = vmatpush1.msra.mxu0 0.0
    %373 = vmatprep.subr.mxu0 0.0
    %374 = vmatpush1.msra.mxu0 0.0
    %375 = vmatprep.subr.mxu0 0.0
    %376 = vmatpush1.msra.mxu0 0.0
    %377 = vmatprep.subr.mxu0 0.0
    %378 = vmatpush1.msra.mxu0 0.0
    %379 = vmatprep.subr.mxu0 0.0
    %380 = vmatpush1.msra.mxu0 0.0
    %381 = vmatprep.subr.mxu0 0.0
    %382 = vmatpush1.msra.mxu0 0.0
    %383 = vmatprep.subr.mxu0 0.0
    %384 = vmatpush1.msra.mxu0 0.0
    %385 = vmatprep.subr.mxu0 0.0
    %386 = vmatpush1.msra.mxu0 0.0
    %387 = vmatprep.subr.mxu0 0.0
    %388 = vmatpush1.msra.mxu0 0.0
    %389 = vmatprep.subr.mxu0 0.0
    %390 = vmatpush1.msra.mxu0 0.0
    %391 = vmatprep.subr.mxu0 0.0
    %392 = vmatpush1.msra.mxu0 0.0
    %393 = vmatprep.subr.mxu0 0.0
    %394 = vmatpush1.msra.mxu0 0.0
    %395 = vmatprep.subr.mxu0 0.0
    %396 = vmatpush1.msra.mxu0 0.0
    %397 = vmatprep.subr.mxu0 0.0
    %398 = vmatpush1.msra.mxu0 0.0
    %399 = vmatprep.subr.mxu0 0.0
    %400 = vmatpush1.msra.mxu0 0.0
    %401 = vmatprep.subr.mxu0 0.0
    %402 = vmatpush1.msra.mxu0 0.0
    %403 = vmatprep.subr.mxu0 0.0
    %404 = vmatpush1.msra.mxu0 0.0
    %405 = vmatprep.subr.mxu0 0.0
    %406 = vmatpush1.msra.mxu0 0.0
    %407 = vmatprep.mubr.f32.mxu0 0.0
    %408 = vmatmul.mubr.f32.gmra.mrb[0].mxu0 %v341
    %v409 = vpop.f32.mrb[0].mxu0
    %v410 = vadd.f32 0.0, %v409
    %v411 = vpop.f32.mrb[0].mxu0
    %412 = vdwg.mxu0
    %413 = vrot.lane.b32.xlu0 %v157, 92
    %v414 = vpop.permute.xlu0 %413
    %v417 = vsel %vm314, %v336, 0
    %419 = vmatprep.subr.mxu0 0.0
    %420 = vmatpush1.msra.mxu0 %v414
    %421 = vmatprep.subr.mxu0 0.0
    %422 = vmatpush1.msra.mxu0 0.0
    %423 = vmatprep.subr.mxu0 0.0
    %424 = vmatpush1.msra.mxu0 0.0
    %425 = vmatprep.subr.mxu0 0.0
    %426 = vmatpush1.msra.mxu0 0.0
    %427 = vmatprep.subr.mxu0 0.0
    %428 = vmatpush1.msra.mxu0 0.0
    %429 = vmatprep.subr.mxu0 0.0
    %430 = vmatpush1.msra.mxu0 0.0
    %431 = vmatprep.subr.mxu0 0.0
    %432 = vmatpush1.msra.mxu0 0.0
    %433 = vmatprep.subr.mxu0 0.0
    %434 = vmatpush1.msra.mxu0 0.0
    %435 = vmatprep.subr.mxu0 0.0
    %436 = vmatpush1.msra.mxu0 0.0
    %437 = vmatprep.subr.mxu0 0.0
    %438 = vmatpush1.msra.mxu0 0.0
    %439 = vmatprep.subr.mxu0 0.0
    %440 = vmatpush1.msra.mxu0 0.0
    %441 = vmatprep.subr.mxu0 0.0
    %442 = vmatpush1.msra.mxu0 0.0
    %443 = vmatprep.subr.mxu0 0.0
    %444 = vmatpush1.msra.mxu0 0.0
    %445 = vmatprep.subr.mxu0 0.0
    %446 = vmatpush1.msra.mxu0 0.0
    %447 = vmatprep.subr.mxu0 0.0
    %448 = vmatpush1.msra.mxu0 0.0
    %449 = vmatprep.subr.mxu0 0.0
    %450 = vmatpush1.msra.mxu0 0.0
    %451 = vmatprep.subr.mxu0 0.0
    %452 = vmatpush1.msra.mxu0 0.0
    %453 = vmatprep.subr.mxu0 0.0
    %454 = vmatpush1.msra.mxu0 0.0
    %455 = vmatprep.subr.mxu0 0.0
    %456 = vmatpush1.msra.mxu0 0.0
    %457 = vmatprep.subr.mxu0 0.0
    %458 = vmatpush1.msra.mxu0 0.0
    %459 = vmatprep.subr.mxu0 0.0
    %460 = vmatpush1.msra.mxu0 0.0
    %461 = vmatprep.subr.mxu0 0.0
    %462 = vmatpush1.msra.mxu0 0.0
    %463 = vmatprep.subr.mxu0 0.0
    %464 = vmatpush1.msra.mxu0 0.0
    %465 = vmatprep.subr.mxu0 0.0
    %466 = vmatpush1.msra.mxu0 0.0
    %467 = vmatprep.subr.mxu0 0.0
    %468 = vmatpush1.msra.mxu0 0.0
    %469 = vmatprep.subr.mxu0 0.0
    %470 = vmatpush1.msra.mxu0 0.0
    %471 = vmatprep.subr.mxu0 0.0
    %472 = vmatpush1.msra.mxu0 0.0
    %473 = vmatprep.subr.mxu0 0.0
    %474 = vmatpush1.msra.mxu0 0.0
    %475 = vmatprep.subr.mxu0 0.0
    %476 = vmatpush1.msra.mxu0 0.0
    %477 = vmatprep.subr.mxu0 0.0
    %478 = vmatpush1.msra.mxu0 0.0
    %479 = vmatprep.subr.mxu0 0.0
    %480 = vmatpush1.msra.mxu0 0.0
    %481 = vmatprep.subr.mxu0 0.0
    %482 = vmatpush1.msra.mxu0 0.0
    %483 = vmatprep.mubr.f32.mxu0 0.0
    %484 = vmatmul.mubr.f32.gmra.mrb[0].mxu0 %v417
    %v485 = vpop.f32.mrb[0].mxu0
    %v486 = vadd.f32 0.0, %v485
    %v487 = vpop.f32.mrb[0].mxu0
    %488 = vdwg.mxu0
    %v489 = vld [vmem:[#allocation7] sm:$0xff]
    %v490 = vld [vmem:[#allocation7 + $0x8] sm:$0xff]
    %v491 = vld [vmem:[#allocation7 + $0x10] sm:$0x3]
    %v492 = vld [vmem:[%s4] sm:$0x1]
    %v494 = vlaneseq
    %v495 = vshrl.u32 %v494, 7
    %v496 = vsub.s32 0, %v495
    %v497 = vrot.slane %v492, %v496
    %v500 = vsel %vm74, %v410, 0
    %v503 = vsel %vm74, %v486, 0
    %v506 = vsel %vm81, %v491, 0
    %508 = vmatprep.subr.mxu0 0.0
    %509 = vmatpush1.msra.mxu0 %v489
    %510 = vmatprep.subr.mxu0 0.0
    %511 = vmatpush1.msra.mxu0 %v490
    %512 = vmatprep.subr.mxu0 0.0
    %513 = vmatpush1.msra.mxu0 %v506
    %514 = vmatprep.subr.mxu0 0.0
    %515 = vmatpush1.msra.mxu0 0.0
    %516 = vmatprep.subr.mxu0 0.0
    %517 = vmatpush1.msra.mxu0 0.0
    %518 = vmatprep.subr.mxu0 0.0
    %519 = vmatpush1.msra.mxu0 0.0
    %520 = vmatprep.subr.mxu0 0.0
    %521 = vmatpush1.msra.mxu0 0.0
    %522 = vmatprep.subr.mxu0 0.0
    %523 = vmatpush1.msra.mxu0 0.0
    %524 = vmatprep.subr.mxu0 0.0
    %525 = vmatpush1.msra.mxu0 0.0
    %526 = vmatprep.subr.mxu0 0.0
    %527 = vmatpush1.msra.mxu0 0.0
    %528 = vmatprep.subr.mxu0 0.0
    %529 = vmatpush1.msra.mxu0 0.0
    %530 = vmatprep.subr.mxu0 0.0
    %531 = vmatpush1.msra.mxu0 0.0
    %532 = vmatprep.subr.mxu0 0.0
    %533 = vmatpush1.msra.mxu0 0.0
    %534 = vmatprep.subr.mxu0 0.0
    %535 = vmatpush1.msra.mxu0 0.0
    %536 = vmatprep.subr.mxu0 0.0
    %537 = vmatpush1.msra.mxu0 0.0
    %538 = vmatprep.subr.mxu0 0.0
    %539 = vmatpush1.msra.mxu0 0.0
    %540 = vmatprep.subr.mxu0 0.0
    %541 = vmatpush1.msra.mxu0 0.0
    %542 = vmatprep.subr.mxu0 0.0
    %543 = vmatpush1.msra.mxu0 0.0
    %544 = vmatprep.subr.mxu0 0.0
    %545 = vmatpush1.msra.mxu0 0.0
    %546 = vmatprep.subr.mxu0 0.0
    %547 = vmatpush1.msra.mxu0 0.0
    %548 = vmatprep.subr.mxu0 0.0
    %549 = vmatpush1.msra.mxu0 0.0
    %550 = vmatprep.subr.mxu0 0.0
    %551 = vmatpush1.msra.mxu0 0.0
    %552 = vmatprep.subr.mxu0 0.0
    %553 = vmatpush1.msra.mxu0 0.0
    %554 = vmatprep.subr.mxu0 0.0
    %555 = vmatpush1.msra.mxu0 0.0
    %556 = vmatprep.subr.mxu0 0.0
    %557 = vmatpush1.msra.mxu0 0.0
    %558 = vmatprep.subr.mxu0 0.0
    %559 = vmatpush1.msra.mxu0 0.0
    %560 = vmatprep.subr.mxu0 0.0
    %561 = vmatpush1.msra.mxu0 0.0
    %562 = vmatprep.subr.mxu0 0.0
    %563 = vmatpush1.msra.mxu0 0.0
    %564 = vmatprep.subr.mxu0 0.0
    %565 = vmatpush1.msra.mxu0 0.0
    %566 = vmatprep.subr.mxu0 0.0
    %567 = vmatpush1.msra.mxu0 0.0
    %568 = vmatprep.subr.mxu0 0.0
    %569 = vmatpush1.msra.mxu0 0.0
    %570 = vmatprep.subr.mxu0 0.0
    %571 = vmatpush1.msra.mxu0 0.0
    %572 = vmatprep.mubr.f32.mxu0 0.0
    %573 = vmatmul.mubr.f32.gmra.mrb[0].mxu0 %v500
    %v574 = vpop.f32.mrb[0].mxu0
    %v575 = vadd.f32 %v497, %v574
    %v576 = vpop.f32.mrb[0].mxu0
    %577 = vmatprep.mubr.f32.mxu0 0.0
    %578 = vmatmul.mubr.f32.gmra.mrb[0].mxu0 %v503
    %v579 = vpop.f32.mrb[0].mxu0
    %v580 = vadd.f32 %v497, %v579
    %v581 = vpop.f32.mrb[0].mxu0
    %582 = vdwg.mxu0
    %583 = vst.msk [vmem:[#allocation8] sm:$0xff] %vm74, %v575
    %584 = vst.msk [vmem:[#allocation8 + $0x8] sm:$0xff] %vm74, %v580
    // Predicated region
    $region34: #{tpu_custom_call.1} parent=1 // pred_check
      _
    $region35: #{tpu_custom_call.1} parent=1 // pred_check_branch
      %586 = sbr.rel (0) target = $region37
    $region36: #{tpu_custom_call.1} parent=1 // pred_region
      %s588 = ssub.s32 256, 256
      %589 = vsyncadd [#allocation4], %s588
      %s590 = sshll.u32 [#allocation8], 4
      %s591 = int_to_ptr.vmem [resolvable:$true] %s590
      %596 = dma.vmem_to_hbm [thread:$0]  %s591, 256, %s5, [#allocation4], 128, 128, 8
    $region37: #{tpu_custom_call.1} parent=1 // pred_fallthru
      _
    // Predicated region
    $region38: #{tpu_custom_call.1} parent=1 // pred_check
      _
    $region39: #{tpu_custom_call.1} parent=1 // pred_check_branch
      %598 = sbr.rel (0) target = $region41
    $region40: #{tpu_custom_call.1} parent=1 // pred_region
      %599 = dma.done [#allocation4], 256
    $region41: #{tpu_custom_call.1} parent=1 // pred_fallthru
      _
    %600 = vsyncpa [#allocation3], 1
    %601 = vsyncpa [#allocation6], 1
    %602 = vsyncpa [#allocation4], 1

</llo_original>
